<compile_context>
chip_gen: v5e
topology: v5e:2x2
jax: 0.10.0
libtpu: 0.0.40
codegen_flags: <defaults>
</compile_context>

<pallas_src>
import jax
import jax.numpy as jnp
from jax.experimental import pallas as pl
from jax.experimental.pallas import tpu as pltpu


# ----------------------------------------------------------------------------
# Parameter slab layout (all row offsets 8-aligned; weights in torch (out, in)
# convention so feature-major compute is W @ x).
# ----------------------------------------------------------------------------
W1S_R = 0      # (32, 3)   fc1_state weight            rows   0:32,  cols 0:3
W2S_R = 32     # (32, 32)  fc2 weight, state half      rows  32:64,  cols 0:32
W2A_R = 64     # (32, 32)  fc2 weight, action half     rows  64:96,  cols 0:32
W3_R = 96      # (16, 32)  fc3 weight                  rows  96:112, cols 0:32
VEC_R = 112    # column-packed vectors                 rows 112:144
#   col 0: fc1_action weight (32,)     col 1: b1_state (32,)
#   col 2: b1_action (32,)             col 3: b2 (32,)
#   col 4: b3 (16,)                    col 5: fc4 weight (16,)
#   col 6, row VEC_R: b4 (scalar)
SLAB_ROWS, SLAB_COLS = 144, 128

FLOPS_PER_ROW = 2 * (3 * 32 + 1 * 32 + 64 * 32 + 32 * 16 + 16 * 1)   # 5408
IO_BYTES_PER_ROW = (3 + 1 + 1) * 4                                    # 20


def _round_up(x, m):
    return ((x + m - 1) // m) * m


def _choose_tb(batch, block_b):
    """Lane-dense batch tile: multiple of 128, >=2 grid steps when possible."""
    block_b = max(128, _round_up(block_b, 128))
    tb_cover = _round_up(max(batch, 1), 128)       # one tile covers the batch
    if tb_cover <= 128:
        return 128
    tb_half = _round_up(pl.cdiv(batch, 2), 128)    # aim for >= 2 grid steps
    return min(block_b, tb_half, tb_cover)


# ----------------------------------------------------------------------------
# Kernel: one batch tile (TB lanes) through the whole MLP, feature-major.
# ----------------------------------------------------------------------------
def critic_kernel(xs_ref, xa_ref, slab_ref, out_ref):
    f32 = jnp.float32
    xs = xs_ref[...]                                   # (3,  TB) state
    xa = xa_ref[...]                                   # (1,  TB) action

    w1s = slab_ref[W1S_R:W1S_R + 32, 0:3]              # (32, 3)
    w1a = slab_ref[VEC_R:VEC_R + 32, 0:1]              # (32, 1)
    b1s = slab_ref[VEC_R:VEC_R + 32, 1:2]              # (32, 1)
    b1a = slab_ref[VEC_R:VEC_R + 32, 2:3]              # (32, 1)
    b2 = slab_ref[VEC_R:VEC_R + 32, 3:4]               # (32, 1)
    b3 = slab_ref[VEC_R:VEC_R + 16, 4:5]               # (16, 1)
    w4 = slab_ref[VEC_R:VEC_R + 16, 5:6]               # (16, 1)
    b4 = slab_ref[VEC_R:VEC_R + 1, 6:7]                # (1, 1)

    # fc1_state + ReLU : (32,3) @ (3,TB) on the MXU
    h_s = jnp.maximum(jnp.dot(w1s, xs, preferred_element_type=f32) + b1s, 0.0)
    # fc1_action + ReLU : rank-1 outer product -> pure VPU, no MXU round trip
    h_a = jnp.maximum(w1a * xa + b1a, 0.0)             # (32,1)*(1,TB) -> (32,TB)

    # fc2 + ReLU : W2 split into state/action halves (== cat((x,a),1) @ W2^T)
    w2s = slab_ref[W2S_R:W2S_R + 32, 0:32]
    w2a = slab_ref[W2A_R:W2A_R + 32, 0:32]
    h2 = (jnp.dot(w2s, h_s, preferred_element_type=f32)
          + jnp.dot(w2a, h_a, preferred_element_type=f32) + b2)
    h2 = jnp.maximum(h2, 0.0)                          # (32, TB)

    # fc3 + ReLU : (16,32) @ (32,TB)
    w3 = slab_ref[W3_R:W3_R + 16, 0:32]
    h3 = jnp.maximum(jnp.dot(w3, h2, preferred_element_type=f32) + b3, 0.0)

    # fc4 : single output feature -> VPU multiply + sublane (XLU) reduce,
    # result is a lane-dense (1, TB) row.
    out = jnp.sum(h3 * w4, axis=0, keepdims=True) + b4
    out_ref[...] = out.astype(out_ref.dtype)


# ----------------------------------------------------------------------------
# Feature-major entry point: xs_t (3, B), xa_t (1, B) -> (1, B).
# ----------------------------------------------------------------------------
def critic_forward_t(xs_t, xa_t, params, *, block_b=2048):
    B = xs_t.shape[1]
    tb = _choose_tb(B, block_b)

    if B < tb:
        # Tiny batch: pad to one full lane-dense tile (a few KiB, negligible).
        pad = tb - B
        xs_t = jnp.pad(xs_t, ((0, 0), (0, pad)))
        xa_t = jnp.pad(xa_t, ((0, 0), (0, pad)))
        bp = tb
    else:
        # Large batch: no padding pass; Pallas masks the ragged tail block.
        bp = B
    nb = pl.cdiv(bp, tb)

    out = pl.pallas_call(
        critic_kernel,
        out_shape=jax.ShapeDtypeStruct((1, bp), jnp.float32),
        grid=(nb,),
        in_specs=[
            pl.BlockSpec((3, tb), lambda i: (0, i)),                  # state, lane-dense
            pl.BlockSpec((1, tb), lambda i: (0, i)),                  # action, lane-dense
            pl.BlockSpec((SLAB_ROWS, SLAB_COLS), lambda i: (0, 0)),   # resident weights
        ],
        out_specs=pl.BlockSpec((1, tb), lambda i: (0, i)),            # lane-dense output
        compiler_params=pltpu.CompilerParams(
            dimension_semantics=("parallel",)),
        cost_estimate=pl.CostEstimate(
            flops=FLOPS_PER_ROW * bp,
            transcendentals=0,
            bytes_accessed=IO_BYTES_PER_ROW * bp + SLAB_ROWS * SLAB_COLS * 4),
    )(xs_t, xa_t, params["slab"])
    return out[:, :B]


# ----------------------------------------------------------------------------
# PyTorch-layout entry point: state (B, 3), action (B, 1) -> (B, 1).
# (The state transpose and the (B,1)<->(1,B) reshapes are layout plumbing.)
# ----------------------------------------------------------------------------
def critic_forward(state, action, params, *, block_b=2048):
    B = state.shape[0]
    xs_t = state.astype(jnp.float32).T                 # (3, B)
    xa_t = action.astype(jnp.float32).reshape(1, B)    # (1, B), free reshape
    out = critic_forward_t(xs_t, xa_t, params, block_b=block_b)   # (1, B)
    return out.reshape(B, 1)                           # free reshape


# ----------------------------------------------------------------------------
# Parameter init (PyTorch nn.Linear default: U(-1/sqrt(fan_in), 1/sqrt(fan_in)))
# Weights are kept in torch (out, in) convention.
# ----------------------------------------------------------------------------
def init_params(key):
    def linear(k, fan_in, fan_out):
        kw, kb = jax.random.split(k)
        bound = 1.0 / jnp.sqrt(float(fan_in))
        w = jax.random.uniform(kw, (fan_out, fan_in), jnp.float32, -bound, bound)
        b = jax.random.uniform(kb, (fan_out,), jnp.float32, -bound, bound)
        return w, b

    k1, k2, k3, k4, k5 = jax.random.split(key, 5)
    w1s, b1s = linear(k1, 3, 32)     # fc1_state
    w1a, b1a = linear(k2, 1, 32)     # fc1_action
    w2, b2 = linear(k3, 64, 32)      # fc2 (acts on cat([x, a], 1))
    w3, b3 = linear(k4, 32, 16)      # fc3
    w4, b4 = linear(k5, 16, 1)       # fc4

    slab = jnp.zeros((SLAB_ROWS, SLAB_COLS), jnp.float32)
    slab = slab.at[W1S_R:W1S_R + 32, 0:3].set(w1s)
    slab = slab.at[W2S_R:W2S_R + 32, 0:32].set(w2[:, 0:32])
    slab = slab.at[W2A_R:W2A_R + 32, 0:32].set(w2[:, 32:64])
    slab = slab.at[W3_R:W3_R + 16, 0:32].set(w3)
    slab = slab.at[VEC_R:VEC_R + 32, 0].set(w1a[:, 0])
    slab = slab.at[VEC_R:VEC_R + 32, 1].set(b1s)
    slab = slab.at[VEC_R:VEC_R + 32, 2].set(b1a)
    slab = slab.at[VEC_R:VEC_R + 32, 3].set(b2)
    slab = slab.at[VEC_R:VEC_R + 16, 4].set(b3)
    slab = slab.at[VEC_R:VEC_R + 16, 5].set(w4[0, :])
    slab = slab.at[VEC_R, 6].set(b4[0])

    raw = dict(w1s=w1s, b1s=b1s, w1a=w1a, b1a=b1a,
               w2=w2, b2=b2, w3=w3, b3=b3, w4=w4, b4=b4)
    return {"slab": slab, "raw": raw}


def critic_ref(state, action, params):
    """Pure-JAX reference mirroring the PyTorch forward (batch-major)."""
    r = params["raw"]
    x = jnp.maximum(state @ r["w1s"].T + r["b1s"], 0.0)
    a = jnp.maximum(action @ r["w1a"].T + r["b1a"], 0.0)
    h = jnp.concatenate([x, a], axis=1)
    h = jnp.maximum(h @ r["w2"].T + r["b2"], 0.0)
    h = jnp.maximum(h @ r["w3"].T + r["b3"], 0.0)
    return h @ r["w4"].T + r["b4"]


if __name__ == "__main__":
    key = jax.random.PRNGKey(0)
    kp, ks, ka, ks2, ka2 = jax.random.split(key, 5)

    params = init_params(kp)

    # Small demo batch (pads to a single 128-lane tile; 1 grid step).
    B = 8
    state = jax.random.normal(ks, (B, 3), jnp.float32)     # X[0]
    action = jax.random.normal(ka, (B, 1), jnp.float32)    # X[1]
    out = jax.block_until_ready(critic_forward(state, action, params))
    ref = critic_ref(state, action, params)
    assert out.shape == (B, 1)
    assert jnp.allclose(out, ref, atol=1e-5, rtol=1e-5)

    # Larger, non-multiple-of-128 batch: 2-step parallel grid + ragged tail.
    B2 = 1000
    state2 = jax.random.normal(ks2, (B2, 3), jnp.float32)
    action2 = jax.random.normal(ka2, (B2, 1), jnp.float32)
    out2 = jax.block_until_ready(critic_forward(state2, action2, params))
    ref2 = critic_ref(state2, action2, params)
    assert out2.shape == (B2, 1)
    assert jnp.allclose(out2, ref2, atol=1e-5, rtol=1e-5)

    print("KERNEL_OK")
</pallas_src>

<mosaic_0001>
module attributes {stable_mosaic.version = 11 : i64} {
  func.func @critic_kernel(%arg0: i32, %arg1: memref<3x128xf32, #tpu.memory_space<vmem>>, %arg2: memref<1x128xf32, #tpu.memory_space<vmem>>, %arg3: memref<144x128xf32, #tpu.memory_space<vmem>>, %arg4: memref<1x128xf32, #tpu.memory_space<vmem>>) attributes {dimension_semantics = [#tpu.dimension_semantics<parallel>], iteration_bounds = array<i64: 1>, scalar_prefetch = 0 : i64, scratch_operands = 0 : i64, tpu.core_type = #tpu.core_type<tc>, window_params = [{transform_indices = @transform_0, window_bounds = array<i64: 3, 128>}, {transform_indices = @transform_1, window_bounds = array<i64: 1, 128>}, {pipeline_mode = #tpu.pipeline_mode<synchronous>, transform_indices = @transform_2, window_bounds = array<i64: 144, 128>}, {transform_indices = @transform_3, window_bounds = array<i64: 1, 128>}]} {
    %c0 = arith.constant 0 : index
    %c0_0 = arith.constant 0 : index
    %0 = vector.load %arg1[%c0, %c0_0] : memref<3x128xf32, #tpu.memory_space<vmem>>, vector<3x128xf32>
    %c0_1 = arith.constant 0 : index
    %c0_2 = arith.constant 0 : index
    %1 = vector.load %arg2[%c0_1, %c0_2] : memref<1x128xf32, #tpu.memory_space<vmem>>, vector<1x128xf32>
    %c0_3 = arith.constant 0 : index
    %c0_4 = arith.constant 0 : index
    %2 = vector.load %arg3[%c0_3, %c0_4] : memref<144x128xf32, #tpu.memory_space<vmem>>, vector<32x3xf32>
    %c112 = arith.constant 112 : index
    %c0_5 = arith.constant 0 : index
    %3 = vector.load %arg3[%c112, %c0_5] : memref<144x128xf32, #tpu.memory_space<vmem>>, vector<32x1xf32>
    %c112_6 = arith.constant 112 : index
    %c1 = arith.constant 1 : index
    %4 = vector.load %arg3[%c112_6, %c1] : memref<144x128xf32, #tpu.memory_space<vmem>>, vector<32x1xf32>
    %c112_7 = arith.constant 112 : index
    %c2 = arith.constant 2 : index
    %5 = vector.load %arg3[%c112_7, %c2] : memref<144x128xf32, #tpu.memory_space<vmem>>, vector<32x1xf32>
    %c112_8 = arith.constant 112 : index
    %c3 = arith.constant 3 : index
    %6 = vector.load %arg3[%c112_8, %c3] : memref<144x128xf32, #tpu.memory_space<vmem>>, vector<32x1xf32>
    %c112_9 = arith.constant 112 : index
    %c4 = arith.constant 4 : index
    %7 = vector.load %arg3[%c112_9, %c4] : memref<144x128xf32, #tpu.memory_space<vmem>>, vector<16x1xf32>
    %c112_10 = arith.constant 112 : index
    %c5 = arith.constant 5 : index
    %8 = vector.load %arg3[%c112_10, %c5] : memref<144x128xf32, #tpu.memory_space<vmem>>, vector<16x1xf32>
    %c112_11 = arith.constant 112 : index
    %c6 = arith.constant 6 : index
    %9 = vector.load %arg3[%c112_11, %c6] : memref<144x128xf32, #tpu.memory_space<vmem>>, vector<1x1xf32>
    %cst = arith.constant dense<0.000000e+00> : vector<32x128xf32>
    %10 = tpu.matmul %2, %0, %cst {dimension_numbers = #tpu.dot_dimension_numbers<[1], [0], [0], [1], [0, 0, 1, 1], [], []>} : vector<32x3xf32>, vector<3x128xf32>, vector<32x128xf32> -> vector<32x128xf32>
    %11 = vector.broadcast %4 : vector<32x1xf32> to vector<32x128xf32>
    %12 = arith.addf %10, %11 : vector<32x128xf32>
    %cst_12 = arith.constant 0.000000e+00 : f32
    %13 = vector.broadcast %cst_12 : f32 to vector<32x128xf32>
    %14 = arith.maximumf %12, %13 : vector<32x128xf32>
    %15 = vector.broadcast %3 : vector<32x1xf32> to vector<32x128xf32>
    %16 = vector.broadcast %1 : vector<1x128xf32> to vector<32x128xf32>
    %17 = arith.mulf %15, %16 : vector<32x128xf32>
    %18 = vector.broadcast %5 : vector<32x1xf32> to vector<32x128xf32>
    %19 = arith.addf %17, %18 : vector<32x128xf32>
    %cst_13 = arith.constant 0.000000e+00 : f32
    %20 = vector.broadcast %cst_13 : f32 to vector<32x128xf32>
    %21 = arith.maximumf %19, %20 : vector<32x128xf32>
    %c32 = arith.constant 32 : index
    %c0_14 = arith.constant 0 : index
    %22 = vector.load %arg3[%c32, %c0_14] : memref<144x128xf32, #tpu.memory_space<vmem>>, vector<32x32xf32>
    %c64 = arith.constant 64 : index
    %c0_15 = arith.constant 0 : index
    %23 = vector.load %arg3[%c64, %c0_15] : memref<144x128xf32, #tpu.memory_space<vmem>>, vector<32x32xf32>
    %cst_16 = arith.constant dense<0.000000e+00> : vector<32x128xf32>
    %24 = tpu.matmul %22, %14, %cst_16 {dimension_numbers = #tpu.dot_dimension_numbers<[1], [0], [0], [1], [0, 0, 1, 1], [], []>} : vector<32x32xf32>, vector<32x128xf32>, vector<32x128xf32> -> vector<32x128xf32>
    %cst_17 = arith.constant dense<0.000000e+00> : vector<32x128xf32>
    %25 = tpu.matmul %23, %21, %cst_17 {dimension_numbers = #tpu.dot_dimension_numbers<[1], [0], [0], [1], [0, 0, 1, 1], [], []>} : vector<32x32xf32>, vector<32x128xf32>, vector<32x128xf32> -> vector<32x128xf32>
    %26 = arith.addf %24, %25 : vector<32x128xf32>
    %27 = vector.broadcast %6 : vector<32x1xf32> to vector<32x128xf32>
    %28 = arith.addf %26, %27 : vector<32x128xf32>
    %cst_18 = arith.constant 0.000000e+00 : f32
    %29 = vector.broadcast %cst_18 : f32 to vector<32x128xf32>
    %30 = arith.maximumf %28, %29 : vector<32x128xf32>
    %c96 = arith.constant 96 : index
    %c0_19 = arith.constant 0 : index
    %31 = vector.load %arg3[%c96, %c0_19] : memref<144x128xf32, #tpu.memory_space<vmem>>, vector<16x32xf32>
    %cst_20 = arith.constant dense<0.000000e+00> : vector<16x128xf32>
    %32 = tpu.matmul %31, %30, %cst_20 {dimension_numbers = #tpu.dot_dimension_numbers<[1], [0], [0], [1], [0, 0, 1, 1], [], []>} : vector<16x32xf32>, vector<32x128xf32>, vector<16x128xf32> -> vector<16x128xf32>
    %33 = vector.broadcast %7 : vector<16x1xf32> to vector<16x128xf32>
    %34 = arith.addf %32, %33 : vector<16x128xf32>
    %cst_21 = arith.constant 0.000000e+00 : f32
    %35 = vector.broadcast %cst_21 : f32 to vector<16x128xf32>
    %36 = arith.maximumf %34, %35 : vector<16x128xf32>
    %37 = vector.broadcast %8 : vector<16x1xf32> to vector<16x128xf32>
    %38 = arith.mulf %36, %37 : vector<16x128xf32>
    %cst_22 = arith.constant dense<0.000000e+00> : vector<128xf32>
    %39 = vector.multi_reduction <add>, %38, %cst_22 [0] : vector<16x128xf32> to vector<128xf32>
    %40 = vector.shape_cast %39 : vector<128xf32> to vector<1x128xf32>
    %41 = vector.broadcast %9 : vector<1x1xf32> to vector<1x128xf32>
    %42 = arith.addf %40, %41 : vector<1x128xf32>
    %c0_23 = arith.constant 0 : index
    %c0_24 = arith.constant 0 : index
    %43 = vector.load %arg4[%c0_23, %c0_24] : memref<1x128xf32, #tpu.memory_space<vmem>>, vector<1x128xf32>
    tpu.vector_store %arg4[%c0_23, %c0_24], %42 {strides = array<i32>} : memref<1x128xf32, #tpu.memory_space<vmem>>, vector<1x128xf32>,
    return
  }
  func.func @transform_0(%arg0: i32) -> (i32, i32) {
    %c0_i32 = arith.constant 0 : i32
    %c0_i32_0 = arith.constant 0 : i32
    return %c0_i32, %arg0 : i32, i32
  }
  func.func @transform_1(%arg0: i32) -> (i32, i32) {
    %c0_i32 = arith.constant 0 : i32
    %c0_i32_0 = arith.constant 0 : i32
    return %c0_i32, %arg0 : i32, i32
  }
  func.func @transform_2(%arg0: i32) -> (i32, i32) {
    %c0_i32 = arith.constant 0 : i32
    %c0_i32_0 = arith.constant 0 : i32
    %c0_i32_1 = arith.constant 0 : i32
    return %c0_i32, %c0_i32_0 : i32, i32
  }
  func.func @transform_3(%arg0: i32) -> (i32, i32) {
    %c0_i32 = arith.constant 0 : i32
    %c0_i32_0 = arith.constant 0 : i32
    return %c0_i32, %arg0 : i32, i32
  }
}

</mosaic_0001>

<llo_original>
// kernel: tpu_custom_call.1
$region0: #{tpu_custom_call.1}
  #allocation0 [shape = 'u32[]', space=smem, size = 0x4, offset = 0x4, fixed_abs, tag = 'smem constant byte address 0x4 - core index']
  #allocation1 [shape = 'u32[72,128]{1,0:T(1,128)}', space=vmem, size = 0x9000, scoped, tag = 'internal scratch']
  %s0 = inlined_call_operand.hbm [shape: f32[3,128], index: 0, kind: input, shape index: {}]
  %s1 = inlined_call_operand.hbm [shape: f32[1,128], index: 1, kind: input, shape index: {}]
  %s2 = inlined_call_operand.hbm [shape: f32[144,128], index: 2, kind: input, shape index: {}]
  %s3 = inlined_call_operand.hbm [shape: f32[1,128], index: 3, kind: output, shape index: {}]
  %s4 = sld [smem:[#allocation0]]
  $region34: #{tpu_custom_call.1} parent=0
    _
  %s6 = ssub.s32 1, %s4
  %s7 = scalar_select 0, %s6, %s4
  $region1: #{tpu_custom_call.1} parent=0
    #allocation2 [shape = 'u8[2048]{0}', space=vmem, size = 0x800, scoped, tag = 'input window, operand 0, single buffered']
    #allocation3 [shape = 's32[1]{0}', space=sflag, size = 0x4, scoped, tag = 'scoped memory for tpu_custom_call.1']
    #allocation4 [shape = 's32[1]{0}', space=sflag, size = 0x4, scoped, tag = 'scoped memory for tpu_custom_call.1']
    #allocation5 [shape = 'u8[512]{0}', space=vmem, size = 0x400, scoped, tag = 'input window, operand 1, single buffered']
    #allocation6 [shape = 's32[1]{0}', space=sflag, size = 0x4, scoped, tag = 'scoped memory for tpu_custom_call.1']
    #allocation7 [shape = 'u8[73728]{0}', space=vmem, size = 0x12000, scoped, tag = 'input window, operand 2, single buffered']
    #allocation8 [shape = 'u8[512]{0}', space=vmem, size = 0x400, scoped, tag = 'output window, operand 0, single buffered']
    %8 = vsyncpa [#allocation3], 0
    %9 = vsyncpa [#allocation6], 0
    %10 = vsyncpa [#allocation4], 0
    // Predicated region
    $region2: #{tpu_custom_call.1} parent=1 // pred_check
      _
    $region3: #{tpu_custom_call.1} parent=1 // pred_check_branch
      %12 = sbr.rel (0) target = $region5
    $region4: #{tpu_custom_call.1} parent=1 // pred_region
      %14 = vsyncadd [#allocation3], 0
      %s16 = sshll.u32 %s0, 4
      %s17 = int_to_ptr.hbm [resolvable:$true] %s16
      %s18 = sshll.u32 [#allocation2], 4
      %s19 = int_to_ptr.vmem [resolvable:$true] %s18
      %21 = dma.hbm_to_vmem [thread:$0]  %s17, 64, %s19, [#allocation3]
    $region5: #{tpu_custom_call.1} parent=1 // pred_fallthru
      _
    // Predicated region
    $region6: #{tpu_custom_call.1} parent=1 // pred_check
      _
    $region7: #{tpu_custom_call.1} parent=1 // pred_check_branch
      %23 = sbr.rel (0) target = $region9
    $region8: #{tpu_custom_call.1} parent=1 // pred_region
      %25 = vsyncadd [#allocation6], 0
      %s27 = sshll.u32 %s1, 4
      %s28 = int_to_ptr.hbm [resolvable:$true] %s27
      %s29 = sshll.u32 [#allocation5], 4
      %s30 = int_to_ptr.vmem [resolvable:$true] %s29
      %32 = dma.hbm_to_vmem [thread:$0]  %s28, 16, %s30, [#allocation6]
    $region9: #{tpu_custom_call.1} parent=1 // pred_fallthru
      _
    // Predicated region
    $region10: #{tpu_custom_call.1} parent=1 // pred_check
      _
    $region11: #{tpu_custom_call.1} parent=1 // pred_check_branch
      %34 = sbr.rel (0) target = $region13
    $region12: #{tpu_custom_call.1} parent=1 // pred_region
      %36 = vsyncadd [#allocation6], 0
      %s37 = sshll.u32 %s2, 4
      %s38 = int_to_ptr.hbm [resolvable:$true] %s37
      %s39 = sshll.u32 [#allocation7], 4
      %s40 = int_to_ptr.vmem [resolvable:$true] %s39
      %45 = dma.hbm_to_vmem [thread:$0]  %s38, 2304, %s40, [#allocation6], 128, 128, 8
    $region13: #{tpu_custom_call.1} parent=1 // pred_fallthru
      _
    // Predicated region
    $region14: #{tpu_custom_call.1} parent=1 // pred_check
      _
    $region15: #{tpu_custom_call.1} parent=1 // pred_check_branch
      %47 = sbr.rel (0) target = $region17
    $region16: #{tpu_custom_call.1} parent=1 // pred_region
      %49 = dma.done [#allocation3], 64
    $region17: #{tpu_custom_call.1} parent=1 // pred_fallthru
      _
    // Predicated region
    $region18: #{tpu_custom_call.1} parent=1 // pred_check
      _
    $region19: #{tpu_custom_call.1} parent=1 // pred_check_branch
      %51 = sbr.rel (0) target = $region21
    $region20: #{tpu_custom_call.1} parent=1 // pred_region
      %53 = dma.done [#allocation6], 16
    $region21: #{tpu_custom_call.1} parent=1 // pred_fallthru
      _
    // Predicated region
    $region22: #{tpu_custom_call.1} parent=1 // pred_check
      _
    $region23: #{tpu_custom_call.1} parent=1 // pred_check_branch
      %55 = sbr.rel (0) target = $region25
    $region24: #{tpu_custom_call.1} parent=1 // pred_region
      %57 = dma.done [#allocation6], 2304
    $region25: #{tpu_custom_call.1} parent=1 // pred_fallthru
      _
    %v58 = vld [vmem:[#allocation2] sm:$0x7]
    %v59 = vld [vmem:[#allocation5] sm:$0x1]
    %v60 = vld [vmem:[#allocation7] sm:$0xff]
    %v61 = vld [vmem:[#allocation7 + $0x8] sm:$0xff]
    %v62 = vld [vmem:[#allocation7 + $0x10] sm:$0xff]
    %v63 = vld [vmem:[#allocation7 + $0x18] sm:$0xff]
    %v64 = vld [vmem:[#allocation7 + $0x70] sm:$0xff]
    %v65 = vld [vmem:[#allocation7 + $0x78] sm:$0xff]
    %v66 = vld [vmem:[#allocation7 + $0x80] sm:$0xff]
    %v67 = vld [vmem:[#allocation7 + $0x88] sm:$0xff]
    %v68 = vld [vmem:[#allocation7 + $0x70] sm:$0xff]
    %v69 = vld [vmem:[#allocation7 + $0x78] sm:$0xff]
    %v70 = vld [vmem:[#allocation7 + $0x70] sm:$0x1]
    %72 = vset.pattern.permute.xlu0 1
    %73 = vperm.xlu0 %72, %v64
    %v74 = vpop.permute.xlu0 %73
    %77 = vset.pattern.permute.xlu0 1
    %78 = vperm.xlu0 %77, %v65
    %v79 = vpop.permute.xlu0 %78
    %82 = vset.pattern.permute.xlu0 1
    %83 = vperm.xlu0 %82, %v66
    %v84 = vpop.permute.xlu0 %83
    %87 = vset.pattern.permute.xlu0 1
    %88 = vperm.xlu0 %87, %v67
    %v89 = vpop.permute.xlu0 %88
    %vm91 = vcmask 23552
    %v93 = vsel %vm91, %v60, 0
    %v96 = vsel %vm91, %v61, 0
    %v99 = vsel %vm91, %v62, 0
    %v102 = vsel %vm91, %v63, 0
    %vm104 = vcmask 1042432
    %v106 = vsel %vm104, %v58, 0
    %108 = vmatpush.msra.mxu0 0.0
    %109 = vmatpush.msra.mxu0 0.0
    %110 = vmatpush.msra.mxu0 0.0
    %111 = vmatpush.msra.mxu0 0.0
    %112 = vmatpush.msra.mxu0 0.0
    %113 = vmatpush.msra.mxu0 0.0
    %114 = vmatpush.msra.mxu0 0.0
    %115 = vmatpush.msra.mxu0 0.0
    %116 = vmatpush.msra.mxu0 0.0
    %117 = vmatpush.msra.mxu0 0.0
    %118 = vmatpush.msra.mxu0 0.0
    %119 = vmatpush.msra.mxu0 0.0
    %120 = vmatpush.msra.mxu0 0.0
    %121 = vmatpush.msra.mxu0 0.0
    %122 = vmatpush.msra.mxu0 0.0
    %123 = vmatpush.msra.mxu0 %v106
    %124 = vmatmul.f32.gmra.mxu0 %v93
    %v125 = vpop.f32.mrf.mxu0
    %v126 = vadd.f32 %v74, %v125
    %127 = vmatmul.f32.gmra.mxu0 %v96
    %v128 = vpop.f32.mrf.mxu0
    %v129 = vadd.f32 %v79, %v128
    %130 = vmatmul.f32.gmra.mxu0 %v99
    %v131 = vpop.f32.mrf.mxu0
    %v132 = vadd.f32 %v84, %v131
    %133 = vmatmul.f32.gmra.mxu0 %v102
    %v134 = vpop.f32.mrf.mxu0
    %v135 = vadd.f32 %v89, %v134
    %136 = vdwg.mxu0
    %v137 = vmax.f32 %v126, 0.0
    %v138 = vmax.f32 %v129, 0.0
    %v139 = vmax.f32 %v132, 0.0
    %v140 = vmax.f32 %v135, 0.0
    %141 = vset.pattern.permute.xlu0 0
    %142 = vperm.xlu0 %141, %v64
    %v143 = vpop.permute.xlu0 %142
    %145 = vset.pattern.permute.xlu0 0
    %146 = vperm.xlu0 %145, %v65
    %v147 = vpop.permute.xlu0 %146
    %149 = vset.pattern.permute.xlu0 0
    %150 = vperm.xlu0 %149, %v66
    %v151 = vpop.permute.xlu0 %150
    %153 = vset.pattern.permute.xlu0 0
    %154 = vperm.xlu0 %153, %v67
    %v155 = vpop.permute.xlu0 %154
    %v158 = vperm.slane %v59, 0
    %v160 = vmul.f32 %v143, %v158
    %v161 = vmul.f32 %v147, %v158
    %v162 = vmul.f32 %v151, %v158
    %v163 = vmul.f32 %v155, %v158
    %164 = vset.pattern.permute.xlu0 2
    %165 = vperm.xlu0 %164, %v64
    %v166 = vpop.permute.xlu0 %165
    %168 = vset.pattern.permute.xlu0 2
    %169 = vperm.xlu0 %168, %v65
    %v170 = vpop.permute.xlu0 %169
    %172 = vset.pattern.permute.xlu0 2
    %173 = vperm.xlu0 %172, %v66
    %v174 = vpop.permute.xlu0 %173
    %176 = vset.pattern.permute.xlu0 2
    %177 = vperm.xlu0 %176, %v67
    %v178 = vpop.permute.xlu0 %177
    %v180 = vadd.f32 %v160, %v166
    %v181 = vadd.f32 %v161, %v170
    %v182 = vadd.f32 %v162, %v174
    %v183 = vadd.f32 %v163, %v178
    %v184 = vmax.f32 %v180, 0.0
    %v185 = vmax.f32 %v181, 0.0
    %v186 = vmax.f32 %v182, 0.0
    %v187 = vmax.f32 %v183, 0.0
    %v188 = vld [vmem:[#allocation7 + $0x20] sm:$0xff]
    %v189 = vld [vmem:[#allocation7 + $0x28] sm:$0xff]
    %v190 = vld [vmem:[#allocation7 + $0x30] sm:$0xff]
    %v191 = vld [vmem:[#allocation7 + $0x38] sm:$0xff]
    %v192 = vld [vmem:[#allocation7 + $0x40] sm:$0xff]
    %v193 = vld [vmem:[#allocation7 + $0x48] sm:$0xff]
    %v194 = vld [vmem:[#allocation7 + $0x50] sm:$0xff]
    %v195 = vld [vmem:[#allocation7 + $0x58] sm:$0xff]
    %vm196 = vcmask 261120
    %v198 = vsel %vm196, %v192, 0
    %v201 = vsel %vm196, %v193, 0
    %v204 = vsel %vm196, %v194, 0
    %v207 = vsel %vm196, %v195, 0
    %209 = vmatpush.msra.mxu0 0.0
    %210 = vmatpush.msra.mxu0 0.0
    %211 = vmatpush.msra.mxu0 0.0
    %212 = vmatpush.msra.mxu0 0.0
    %213 = vmatpush.msra.mxu0 0.0
    %214 = vmatpush.msra.mxu0 0.0
    %215 = vmatpush.msra.mxu0 0.0
    %216 = vmatpush.msra.mxu0 0.0
    %217 = vmatpush.msra.mxu0 0.0
    %218 = vmatpush.msra.mxu0 0.0
    %219 = vmatpush.msra.mxu0 0.0
    %220 = vmatpush.msra.mxu0 0.0
    %221 = vmatpush.msra.mxu0 %v187
    %222 = vmatpush.msra.mxu0 %v186
    %223 = vmatpush.msra.mxu0 %v185
    %224 = vmatpush.msra.mxu0 %v184
    %225 = vmatmul.f32.gmra.mxu0 %v198
    %v226 = vpop.f32.mrf.mxu0
    %v227 = vadd.f32 0.0, %v226
    %228 = vmatmul.f32.gmra.mxu0 %v201
    %v229 = vpop.f32.mrf.mxu0
    %v230 = vadd.f32 0.0, %v229
    %231 = vmatmul.f32.gmra.mxu0 %v204
    %v232 = vpop.f32.mrf.mxu0
    %v233 = vadd.f32 0.0, %v232
    %234 = vmatmul.f32.gmra.mxu0 %v207
    %v235 = vpop.f32.mrf.mxu0
    %v236 = vadd.f32 0.0, %v235
    %237 = vdwg.mxu0
    %v239 = vsel %vm196, %v188, 0
    %v242 = vsel %vm196, %v189, 0
    %v245 = vsel %vm196, %v190, 0
    %v248 = vsel %vm196, %v191, 0
    %250 = vmatpush.msra.mxu0 0.0
    %251 = vmatpush.msra.mxu0 0.0
    %252 = vmatpush.msra.mxu0 0.0
    %253 = vmatpush.msra.mxu0 0.0
    %254 = vmatpush.msra.mxu0 0.0
    %255 = vmatpush.msra.mxu0 0.0
    %256 = vmatpush.msra.mxu0 0.0
    %257 = vmatpush.msra.mxu0 0.0
    %258 = vmatpush.msra.mxu0 0.0
    %259 = vmatpush.msra.mxu0 0.0
    %260 = vmatpush.msra.mxu0 0.0
    %261 = vmatpush.msra.mxu0 0.0
    %262 = vmatpush.msra.mxu0 %v140
    %263 = vmatpush.msra.mxu0 %v139
    %264 = vmatpush.msra.mxu0 %v138
    %265 = vmatpush.msra.mxu0 %v137
    %266 = vmatmul.f32.gmra.mxu0 %v239
    %v267 = vpop.f32.mrf.mxu0
    %v268 = vadd.f32 %v227, %v267
    %269 = vmatmul.f32.gmra.mxu0 %v242
    %v270 = vpop.f32.mrf.mxu0
    %v271 = vadd.f32 %v230, %v270
    %272 = vmatmul.f32.gmra.mxu0 %v245
    %v273 = vpop.f32.mrf.mxu0
    %v274 = vadd.f32 %v233, %v273
    %275 = vmatmul.f32.gmra.mxu0 %v248
    %v276 = vpop.f32.mrf.mxu0
    %v277 = vadd.f32 %v236, %v276
    %278 = vdwg.mxu0
    %279 = vset.pattern.permute.xlu0 3
    %280 = vperm.xlu0 %279, %v64
    %v281 = vpop.permute.xlu0 %280
    %283 = vset.pattern.permute.xlu0 3
    %284 = vperm.xlu0 %283, %v65
    %v285 = vpop.permute.xlu0 %284
    %287 = vset.pattern.permute.xlu0 3
    %288 = vperm.xlu0 %287, %v66
    %v289 = vpop.permute.xlu0 %288
    %291 = vset.pattern.permute.xlu0 3
    %292 = vperm.xlu0 %291, %v67
    %v293 = vpop.permute.xlu0 %292
    %v295 = vadd.f32 %v268, %v281
    %v296 = vadd.f32 %v271, %v285
    %v297 = vadd.f32 %v274, %v289
    %v298 = vadd.f32 %v277, %v293
    %v299 = vmax.f32 %v295, 0.0
    %v300 = vmax.f32 %v296, 0.0
    %v301 = vmax.f32 %v297, 0.0
    %v302 = vmax.f32 %v298, 0.0
    %v303 = vld [vmem:[#allocation7 + $0x60] sm:$0xff]
    %v304 = vld [vmem:[#allocation7 + $0x68] sm:$0xff]
    %306 = vset.pattern.permute.xlu0 4
    %307 = vperm.xlu0 %306, %v68
    %v308 = vpop.permute.xlu0 %307
    %311 = vset.pattern.permute.xlu0 4
    %312 = vperm.xlu0 %311, %v69
    %v313 = vpop.permute.xlu0 %312
    %v316 = vsel %vm196, %v303, 0
    %v319 = vsel %vm196, %v304, 0
    %321 = vmatpush.msra.mxu0 0.0
    %322 = vmatpush.msra.mxu0 0.0
    %323 = vmatpush.msra.mxu0 0.0
    %324 = vmatpush.msra.mxu0 0.0
    %325 = vmatpush.msra.mxu0 0.0
    %326 = vmatpush.msra.mxu0 0.0
    %327 = vmatpush.msra.mxu0 0.0
    %328 = vmatpush.msra.mxu0 0.0
    %329 = vmatpush.msra.mxu0 0.0
    %330 = vmatpush.msra.mxu0 0.0
    %331 = vmatpush.msra.mxu0 0.0
    %332 = vmatpush.msra.mxu0 0.0
    %333 = vmatpush.msra.mxu0 %v302
    %334 = vmatpush.msra.mxu0 %v301
    %335 = vmatpush.msra.mxu0 %v300
    %336 = vmatpush.msra.mxu0 %v299
    %337 = vmatmul.f32.gmra.mxu0 %v316
    %v338 = vpop.f32.mrf.mxu0
    %v339 = vadd.f32 %v308, %v338
    %340 = vmatmul.f32.gmra.mxu0 %v319
    %v341 = vpop.f32.mrf.mxu0
    %v342 = vadd.f32 %v313, %v341
    %343 = vdwg.mxu0
    %v344 = vmax.f32 %v339, 0.0
    %v345 = vmax.f32 %v342, 0.0
    %346 = vset.pattern.permute.xlu0 5
    %347 = vperm.xlu0 %346, %v68
    %v348 = vpop.permute.xlu0 %347
    %350 = vset.pattern.permute.xlu0 5
    %351 = vperm.xlu0 %350, %v69
    %v352 = vpop.permute.xlu0 %351
    %v354 = vmul.f32 %v344, %v348
    %v355 = vmul.f32 %v345, %v352
    %v356 = vadd.f32 %v354, %v355
    %v357 = vrot.slane %v356, 4
    %v358 = vadd.f32 %v356, %v357
    %v359 = vrot.slane %v358, 2
    %v360 = vadd.f32 %v358, %v359
    %v361 = vrot.slane %v360, 1
    %v362 = vadd.f32 %v360, %v361
    %364 = vset.pattern.permute.xlu0 6
    %365 = vperm.xlu0 %364, %v70
    %v366 = vpop.permute.xlu0 %365
    %v368 = vadd.f32 %v362, %v366
    %369 = vst [vmem:[#allocation8] sm:$0x1] %v368
    // Predicated region
    $region26: #{tpu_custom_call.1} parent=1 // pred_check
      _
    $region27: #{tpu_custom_call.1} parent=1 // pred_check_branch
      %371 = sbr.rel (0) target = $region29
    $region28: #{tpu_custom_call.1} parent=1 // pred_region
      %373 = vsyncadd [#allocation4], 0
      %s375 = sshll.u32 [#allocation8], 4
      %s376 = int_to_ptr.vmem [resolvable:$true] %s375
      %s377 = sshll.u32 %s3, 4
      %s378 = int_to_ptr.hbm [resolvable:$true] %s377
      %380 = dma.vmem_to_hbm [thread:$0]  %s376, 16, %s378, [#allocation4]
    $region29: #{tpu_custom_call.1} parent=1 // pred_fallthru
      _
    // Predicated region
    $region30: #{tpu_custom_call.1} parent=1 // pred_check
      _
    $region31: #{tpu_custom_call.1} parent=1 // pred_check_branch
      %382 = sbr.rel (0) target = $region33
    $region32: #{tpu_custom_call.1} parent=1 // pred_region
      %384 = dma.done [#allocation4], 16
    $region33: #{tpu_custom_call.1} parent=1 // pred_fallthru
      _
    %385 = vsyncpa [#allocation3], 1
    %386 = vsyncpa [#allocation6], 1
    %387 = vsyncpa [#allocation4], 1

</llo_original>
